<compile_context>
chip_gen: v7x
topology: tpu7x:2x2x1
jax: 0.10.0
libtpu: 0.0.40
codegen_flags: <defaults>
</compile_context>

<pallas_src>
import functools

import jax
import jax.numpy as jnp
from jax.experimental import pallas as pl
from jax.experimental.pallas import tpu as pltpu


def _round_up(v, m):
    return ((v + m - 1) // m) * m


def _vmem_capacity_bytes():
    """Best-effort physical VMEM size; conservative fallback if unavailable."""
    try:
        info = pltpu.get_tpu_info()
        cap = getattr(info, "vmem_capacity_bytes", None)
        if cap:
            return int(cap)
    except Exception:
        pass
    return 64 * 1024 * 1024  # v7x per-TC VMEM (smallest current generation)


def _dice_partial_kernel(x_ref, t_ref, inter_out, sum_out, inter_acc, sum_acc,
                         *, rows_total, needs_mask):
    """Per-sample streaming reduction over row tiles.

    Grid: (N samples ["parallel"], KT row tiles ["arbitrary"]).
    Steady state is pure VPU adds into per-lane (TILE_R, LANES) accumulators;
    a single sublane (XLU) reduction happens once in the finalize branch.
    """
    k = pl.program_id(1)

    @pl.when(k == 0)
    def _init():
        inter_acc[...] = jnp.zeros_like(inter_acc)
        sum_acc[...] = jnp.zeros_like(sum_acc)

    x = x_ref[0].astype(jnp.float32)          # (TILE_R, LANES)
    t = t_ref[0].astype(jnp.float32)

    # sigmoid(x) = 0.5 * (tanh(x/2) + 1): one EUP op instead of exp + recip.
    probs = 0.5 * (jnp.tanh(0.5 * x) + 1.0)

    if needs_mask:
        # Tail tile may extend past the real row count: zero the invalid rows.
        tile_r = inter_acc.shape[0]
        rows_left = rows_total - k * tile_r
        row_ids = jax.lax.broadcasted_iota(jnp.int32, inter_acc.shape, 0)
        valid = row_ids < rows_left
        probs = jnp.where(valid, probs, 0.0)
        t = jnp.where(valid, t, 0.0)

    inter_acc[...] += probs * t
    sum_acc[...] += probs + t

    @pl.when(k == pl.num_programs(1) - 1)
    def _finalize():
        inter_out[...] = jnp.sum(inter_acc[...], axis=0, keepdims=True)[None]
        sum_out[...] = jnp.sum(sum_acc[...], axis=0, keepdims=True)[None]


def dice_loss(output, targets, *, lanes=None, tile_rows=None):
    """Pallas implementation of DiceLoss.forward(output, targets)."""
    assert output.shape == targets.shape
    n = output.shape[0]

    x = output.reshape(n, -1)
    if x.dtype not in (jnp.float32, jnp.bfloat16):
        x = x.astype(jnp.float32)
    t = targets.reshape(n, -1)
    if t.dtype not in (jnp.float32, jnp.bfloat16):
        # bool / int masks need a float representation; floats pass through
        # untouched (no standalone bf16 cast sweep).
        t = t.astype(jnp.float32)
    f = x.shape[1]

    # ---- choose the lane width (last dim, multiple of 128) -------------------
    lane_candidates = (1024, 512, 256, 128)
    divisors = [c for c in lane_candidates if f % c == 0]
    if lanes is not None:
        l = int(lanes)
        assert l % 128 == 0
    elif divisors:
        good = [c for c in divisors if f // c >= 8]   # prefer >=8 rows (full sublanes)
        l = max(good) if good else min(divisors)
    else:
        l = 128

    if f % l != 0:
        # TODO(synk): a flat-layout kernel with in-kernel lane masking would
        # avoid this extra HBM copy; only hit when F is not lane-aligned.
        f_pad = _round_up(f, l)
        # Pad logits hugely negative (tanh-sigmoid -> exactly 0) and targets
        # with 0 so the padded tail contributes nothing.
        x = jnp.pad(x, ((0, 0), (0, f_pad - f)), constant_values=-1e30)
        t = jnp.pad(t, ((0, 0), (0, f_pad - f)), constant_values=0)
        f = f_pad

    r = f // l
    x = x.reshape(n, r, l)   # free reshape (row-major contiguous)
    t = t.reshape(n, r, l)

    x_bytes = jnp.dtype(x.dtype).itemsize
    t_bytes = jnp.dtype(t.dtype).itemsize

    # ---- generation-aware VMEM budget / row-tile size -------------------------
    vmem_cap = _vmem_capacity_bytes()
    budget = min(max(vmem_cap // 2, 8 * 1024 * 1024), 48 * 1024 * 1024)
    # 2x double-buffered input blocks (x, t) + 2 f32 accumulators, per row.
    bytes_per_row = l * (2 * x_bytes + 2 * t_bytes + 2 * 4)
    max_rows = max(8, budget // bytes_per_row)

    if r <= 8:
        tile_r = r                                   # full dim (< 8 sublanes allowed)
    elif tile_rows is not None:
        tr = int(tile_rows)
        tile_r = r if tr >= r else max(8, (tr // 8) * 8)
    else:
        tile_r = r if r <= max_rows else max(8, (max_rows // 8) * 8)

    kt = -(-r // tile_r)
    needs_mask = (r % tile_r) != 0
    vmem_limit = int(min(vmem_cap - 4 * 1024 * 1024, budget + 8 * 1024 * 1024))

    kernel = functools.partial(
        _dice_partial_kernel, rows_total=r, needs_mask=needs_mask)

    inter_out, sum_out = pl.pallas_call(
        kernel,
        out_shape=(
            jax.ShapeDtypeStruct((n, 1, l), jnp.float32),
            jax.ShapeDtypeStruct((n, 1, l), jnp.float32),
        ),
        grid_spec=pltpu.PrefetchScalarGridSpec(
            num_scalar_prefetch=0,
            grid=(n, kt),
            in_specs=[
                pl.BlockSpec((1, tile_r, l), lambda i, k: (i, k, 0)),
                pl.BlockSpec((1, tile_r, l), lambda i, k: (i, k, 0)),
            ],
            out_specs=[
                pl.BlockSpec((1, 1, l), lambda i, k: (i, 0, 0)),
                pl.BlockSpec((1, 1, l), lambda i, k: (i, 0, 0)),
            ],
            scratch_shapes=[
                pltpu.VMEM((tile_r, l), jnp.float32),
                pltpu.VMEM((tile_r, l), jnp.float32),
            ],
        ),
        compiler_params=pltpu.CompilerParams(
            dimension_semantics=("parallel", "arbitrary"),
            vmem_limit_bytes=vmem_limit,
        ),
    )(x, t)

    # Final tiny combine (N x LANES elements): cheap, done in plain JAX.
    inter = jnp.sum(inter_out, axis=(1, 2))
    denom = jnp.sum(sum_out, axis=(1, 2))
    smooth = jnp.float32(1.0)
    per_sample = 2.0 * (inter + smooth) / (denom + smooth)
    return 1.0 - jnp.sum(per_sample) / jnp.float32(n)


def dice_loss_ref(output, targets):
    # Pure-JAX reference mirroring the PyTorch module.
    n = output.shape[0]
    smooth = 1.0
    probs = jax.nn.sigmoid(output.astype(jnp.float32))
    m1 = probs.reshape(n, -1)
    m2 = targets.astype(jnp.float32).reshape(n, -1)
    inter = jnp.sum(m1 * m2, axis=1)
    per = 2.0 * (inter + smooth) / (jnp.sum(m1, axis=1) + jnp.sum(m2, axis=1) + smooth)
    return 1.0 - jnp.sum(per) / n


if __name__ == "__main__":
    key = jax.random.PRNGKey(0)
    k1, k2, k3, k4, k5, k6 = jax.random.split(key, 6)

    # 1) Lane-aligned NCHW shape (F = 1024 -> 8 x 128 slab, single row tile).
    N, C, H, W = 2, 4, 16, 16
    out_a = jax.random.normal(k1, (N, C, H, W), dtype=jnp.float32)
    tgt_a = (jax.random.uniform(k2, (N, C, H, W)) > 0.5).astype(jnp.float32)
    loss_a = jax.block_until_ready(dice_loss(out_a, tgt_a))
    ref_a = jax.block_until_ready(dice_loss_ref(out_a, tgt_a))

    # 2) Forced multi-tile reduction with ragged row count (exercises the
    #    k-accumulation path and the in-kernel tail-row masking).
    out_b = jax.random.normal(k3, (2, 4, 32, 24), dtype=jnp.float32)   # F = 3072
    tgt_b = (jax.random.uniform(k4, (2, 4, 32, 24)) > 0.5).astype(jnp.float32)
    loss_b = jax.block_until_ready(dice_loss(out_b, tgt_b, lanes=256, tile_rows=8))
    ref_b = jax.block_until_ready(dice_loss_ref(out_b, tgt_b))

    # 3) F not lane-aligned (F = 960): pad-fallback path.
    out_c = jax.random.normal(k5, (2, 4, 16, 15), dtype=jnp.float32)
    tgt_c = (jax.random.uniform(k6, (2, 4, 16, 15)) > 0.5).astype(jnp.float32)
    loss_c = jax.block_until_ready(dice_loss(out_c, tgt_c))
    ref_c = jax.block_until_ready(dice_loss_ref(out_c, tgt_c))

    assert jnp.allclose(loss_a, ref_a, atol=1e-4, rtol=1e-4), (loss_a, ref_a)
    assert jnp.allclose(loss_b, ref_b, atol=1e-4, rtol=1e-4), (loss_b, ref_b)
    assert jnp.allclose(loss_c, ref_c, atol=1e-4, rtol=1e-4), (loss_c, ref_c)
    print("KERNEL_OK")
</pallas_src>

<mosaic_0001>
module attributes {stable_mosaic.version = 11 : i64} {
  func.func @_dice_partial_kernel(%arg0: i32, %arg1: i32, %arg2: memref<1x8x128xf32, #tpu.memory_space<vmem>>, %arg3: memref<1x8x128xf32, #tpu.memory_space<vmem>>, %arg4: memref<1x1x128xf32, #tpu.memory_space<vmem>>, %arg5: memref<1x1x128xf32, #tpu.memory_space<vmem>>, %arg6: memref<8x128xf32, #tpu.memory_space<vmem>>, %arg7: memref<8x128xf32, #tpu.memory_space<vmem>>) attributes {dimension_semantics = [#tpu.dimension_semantics<parallel>, #tpu.dimension_semantics<arbitrary>], iteration_bounds = array<i64: 2, 1>, scalar_prefetch = 0 : i64, scratch_operands = 2 : i64, tpu.core_type = #tpu.core_type<tc>, window_params = [{transform_indices = @transform_0, window_bounds = array<i64: 1, 8, 128>}, {transform_indices = @transform_1, window_bounds = array<i64: 1, 8, 128>}, {transform_indices = @transform_2, window_bounds = array<i64: 1, 1, 128>}, {transform_indices = @transform_3, window_bounds = array<i64: 1, 1, 128>}]} {
    %c0_i32 = arith.constant 0 : i32
    %0 = arith.cmpi eq, %arg1, %c0_i32 : i32
    %1 = arith.extui %0 : i1 to i32
    %c0_i32_0 = arith.constant 0 : i32
    %2 = arith.cmpi ne, %1, %c0_i32_0 : i32
    scf.if %2 {
      %cst_18 = arith.constant 0.000000e+00 : f32
      %25 = vector.broadcast %cst_18 : f32 to vector<8x128xf32>
      %c0_19 = arith.constant 0 : index
      %c0_20 = arith.constant 0 : index
      %26 = vector.load %arg6[%c0_19, %c0_20] : memref<8x128xf32, #tpu.memory_space<vmem>>, vector<8x128xf32>
      tpu.vector_store %arg6[%c0_19, %c0_20], %25 {strides = array<i32>} : memref<8x128xf32, #tpu.memory_space<vmem>>, vector<8x128xf32>,
      %cst_21 = arith.constant 0.000000e+00 : f32
      %27 = vector.broadcast %cst_21 : f32 to vector<8x128xf32>
      %c0_22 = arith.constant 0 : index
      %c0_23 = arith.constant 0 : index
      %28 = vector.load %arg7[%c0_22, %c0_23] : memref<8x128xf32, #tpu.memory_space<vmem>>, vector<8x128xf32>
      tpu.vector_store %arg7[%c0_22, %c0_23], %27 {strides = array<i32>} : memref<8x128xf32, #tpu.memory_space<vmem>>, vector<8x128xf32>,
    } else {
    }
    %c0 = arith.constant 0 : index
    %c0_1 = arith.constant 0 : index
    %c0_2 = arith.constant 0 : index
    %3 = vector.load %arg2[%c0, %c0_1, %c0_2] : memref<1x8x128xf32, #tpu.memory_space<vmem>>, vector<1x8x128xf32>
    %4 = vector.shape_cast %3 : vector<1x8x128xf32> to vector<8x128xf32>
    %c0_3 = arith.constant 0 : index
    %c0_4 = arith.constant 0 : index
    %c0_5 = arith.constant 0 : index
    %5 = vector.load %arg3[%c0_3, %c0_4, %c0_5] : memref<1x8x128xf32, #tpu.memory_space<vmem>>, vector<1x8x128xf32>
    %6 = vector.shape_cast %5 : vector<1x8x128xf32> to vector<8x128xf32>
    %cst = arith.constant 5.000000e-01 : f32
    %7 = vector.broadcast %cst : f32 to vector<8x128xf32>
    %8 = arith.mulf %7, %4 : vector<8x128xf32>
    %9 = math.tanh %8 : vector<8x128xf32>
    %cst_6 = arith.constant 1.000000e+00 : f32
    %10 = vector.broadcast %cst_6 : f32 to vector<8x128xf32>
    %11 = arith.addf %9, %10 : vector<8x128xf32>
    %cst_7 = arith.constant 5.000000e-01 : f32
    %12 = vector.broadcast %cst_7 : f32 to vector<8x128xf32>
    %13 = arith.mulf %12, %11 : vector<8x128xf32>
    %c0_8 = arith.constant 0 : index
    %c0_9 = arith.constant 0 : index
    %14 = vector.load %arg6[%c0_8, %c0_9] : memref<8x128xf32, #tpu.memory_space<vmem>>, vector<8x128xf32>
    %15 = arith.mulf %13, %6 : vector<8x128xf32>
    %16 = arith.addf %14, %15 : vector<8x128xf32>
    %c0_10 = arith.constant 0 : index
    %c0_11 = arith.constant 0 : index
    %17 = vector.load %arg6[%c0_10, %c0_11] : memref<8x128xf32, #tpu.memory_space<vmem>>, vector<8x128xf32>
    tpu.vector_store %arg6[%c0_10, %c0_11], %16 {strides = array<i32>} : memref<8x128xf32, #tpu.memory_space<vmem>>, vector<8x128xf32>,
    %c0_12 = arith.constant 0 : index
    %c0_13 = arith.constant 0 : index
    %18 = vector.load %arg7[%c0_12, %c0_13] : memref<8x128xf32, #tpu.memory_space<vmem>>, vector<8x128xf32>
    %19 = arith.addf %13, %6 : vector<8x128xf32>
    %20 = arith.addf %18, %19 : vector<8x128xf32>
    %c0_14 = arith.constant 0 : index
    %c0_15 = arith.constant 0 : index
    %21 = vector.load %arg7[%c0_14, %c0_15] : memref<8x128xf32, #tpu.memory_space<vmem>>, vector<8x128xf32>
    tpu.vector_store %arg7[%c0_14, %c0_15], %20 {strides = array<i32>} : memref<8x128xf32, #tpu.memory_space<vmem>>, vector<8x128xf32>,
    %c0_i32_16 = arith.constant 0 : i32
    %22 = arith.cmpi eq, %arg1, %c0_i32_16 : i32
    %23 = arith.extui %22 : i1 to i32
    %c0_i32_17 = arith.constant 0 : i32
    %24 = arith.cmpi ne, %23, %c0_i32_17 : i32
    scf.if %24 {
      %c0_18 = arith.constant 0 : index
      %c0_19 = arith.constant 0 : index
      %25 = vector.load %arg6[%c0_18, %c0_19] : memref<8x128xf32, #tpu.memory_space<vmem>>, vector<8x128xf32>
      %cst_20 = arith.constant dense<0.000000e+00> : vector<128xf32>
      %26 = vector.multi_reduction <add>, %25, %cst_20 [0] : vector<8x128xf32> to vector<128xf32>
      %27 = vector.shape_cast %26 : vector<128xf32> to vector<1x128xf32>
      %28 = vector.shape_cast %27 : vector<1x128xf32> to vector<1x1x128xf32>
      %c0_21 = arith.constant 0 : index
      %c0_22 = arith.constant 0 : index
      %c0_23 = arith.constant 0 : index
      %29 = vector.load %arg4[%c0_21, %c0_22, %c0_23] : memref<1x1x128xf32, #tpu.memory_space<vmem>>, vector<1x1x128xf32>
      tpu.vector_store %arg4[%c0_21, %c0_22, %c0_23], %28 {strides = array<i32>} : memref<1x1x128xf32, #tpu.memory_space<vmem>>, vector<1x1x128xf32>,
      %c0_24 = arith.constant 0 : index
      %c0_25 = arith.constant 0 : index
      %30 = vector.load %arg7[%c0_24, %c0_25] : memref<8x128xf32, #tpu.memory_space<vmem>>, vector<8x128xf32>
      %cst_26 = arith.constant dense<0.000000e+00> : vector<128xf32>
      %31 = vector.multi_reduction <add>, %30, %cst_26 [0] : vector<8x128xf32> to vector<128xf32>
      %32 = vector.shape_cast %31 : vector<128xf32> to vector<1x128xf32>
      %33 = vector.shape_cast %32 : vector<1x128xf32> to vector<1x1x128xf32>
      %c0_27 = arith.constant 0 : index
      %c0_28 = arith.constant 0 : index
      %c0_29 = arith.constant 0 : index
      %34 = vector.load %arg5[%c0_27, %c0_28, %c0_29] : memref<1x1x128xf32, #tpu.memory_space<vmem>>, vector<1x1x128xf32>
      tpu.vector_store %arg5[%c0_27, %c0_28, %c0_29], %33 {strides = array<i32>} : memref<1x1x128xf32, #tpu.memory_space<vmem>>, vector<1x1x128xf32>,
    } else {
    }
    return
  }
  func.func @transform_0(%arg0: i32, %arg1: i32) -> (i32, i32, i32) {
    %c0_i32 = arith.constant 0 : i32
    %c0_i32_0 = arith.constant 0 : i32
    return %arg0, %arg1, %c0_i32 : i32, i32, i32
  }
  func.func @transform_1(%arg0: i32, %arg1: i32) -> (i32, i32, i32) {
    %c0_i32 = arith.constant 0 : i32
    %c0_i32_0 = arith.constant 0 : i32
    return %arg0, %arg1, %c0_i32 : i32, i32, i32
  }
  func.func @transform_2(%arg0: i32, %arg1: i32) -> (i32, i32, i32) {
    %c0_i32 = arith.constant 0 : i32
    %c0_i32_0 = arith.constant 0 : i32
    %c0_i32_1 = arith.constant 0 : i32
    return %arg0, %c0_i32, %c0_i32_0 : i32, i32, i32
  }
  func.func @transform_3(%arg0: i32, %arg1: i32) -> (i32, i32, i32) {
    %c0_i32 = arith.constant 0 : i32
    %c0_i32_0 = arith.constant 0 : i32
    %c0_i32_1 = arith.constant 0 : i32
    return %arg0, %c0_i32, %c0_i32_0 : i32, i32, i32
  }
}

</mosaic_0001>

<llo_original>
// kernel: tpu_custom_call.1
$region0: #{tpu_custom_call.1}
  #allocation0 [shape = 'u32[]', space=smem, size = 0x4, offset = 0x4, fixed_abs, tag = 'smem constant byte address 0x4 - core index']
  #allocation1 [shape = 'u32[144,128]{1,0:T(1,128)}', space=vmem, size = 0x12000, scoped, tag = 'internal scratch']
  #allocation2 [shape = 'f32[8,128]{1,0:T(8,128)}', space=vmem, size = 0x1000, scoped, tag = 'scratch operand']
  #allocation3 [shape = 'f32[8,128]{1,0:T(8,128)}', space=vmem, size = 0x1000, scoped, tag = 'scratch operand']
  %s0 = inlined_call_operand.hbm [shape: f32[2,8,128], index: 0, kind: input, shape index: {}]
  %s1 = inlined_call_operand.hbm [shape: f32[2,8,128], index: 1, kind: input, shape index: {}]
  %s2 = inlined_call_operand.hbm [shape: f32[2,1,128], index: 2, kind: output, shape index: {0}]
  %s3 = inlined_call_operand.hbm [shape: f32[2,1,128], index: 3, kind: output, shape index: {1}]
  %4 = xla_tuple %s2, %s3
  %s5 = sld [smem:[#allocation0]]
  $region65: #{tpu_custom_call.1} parent=0
    _
  %s7 = ssub.s32 1, %s5
  %s8 = scalar_select 0, %s7, %s5
  $region1: #{tpu_custom_call.1} parent=0
    #allocation4 [shape = 'u8[8192]{0}', space=vmem, size = 0x2000, scoped, tag = 'input window, operand 0']
    #allocation5 [shape = 's32[2]{0}', space=sflag, size = 0x8, scoped, tag = 'scoped memory for tpu_custom_call.1']
    #allocation6 [shape = 's32[2]{0}', space=sflag, size = 0x8, scoped, tag = 'scoped memory for tpu_custom_call.1']
    #allocation7 [shape = 'u8[8192]{0}', space=vmem, size = 0x2000, scoped, tag = 'input window, operand 1']
    #allocation8 [shape = 's32[2]{0}', space=sflag, size = 0x8, scoped, tag = 'scoped memory for tpu_custom_call.1']
    #allocation9 [shape = 'u8[1024]{0}', space=vmem, size = 0x400, scoped, tag = 'output window, operand 0']
    #allocation10 [shape = 'u8[1024]{0}', space=vmem, size = 0x400, scoped, tag = 'output window, operand 1']
    #allocation11 [shape = 's32[2]{0}', space=sflag, size = 0x8, scoped, tag = 'scoped memory for tpu_custom_call.1']
    %9 = vsyncpa [#allocation5], 0
    %s10 = scalar_lea.sflag [#allocation5], 1
    %11 = vsyncpa %s10, 0
    %12 = vsyncpa [#allocation8], 0
    %s13 = scalar_lea.sflag [#allocation8], 1
    %14 = vsyncpa %s13, 0
    %15 = vsyncpa [#allocation6], 0
    %s16 = scalar_lea.sflag [#allocation6], 1
    %17 = vsyncpa %s16, 0
    %18 = vsyncpa [#allocation11], 0
    %s19 = scalar_lea.sflag [#allocation11], 1
    %20 = vsyncpa %s19, 0
    loop: start=0, step=1, limit=4
    $region2: #{tpu_custom_call.1} parent=1 // loop_pre_header
      _
    $region3: #{tpu_custom_call.1} parent=1 // loop_header
      %s22 = sphi 0, %s26
      %p23 = scmp.ge.s32.totalorder %s22, 4
      %s29 = sphi 0, %s41
      %s30 = sphi 0, %s37
      %s31 = sphi 0, %s29
      %s32 = sphi 0, %s30
      %s33 = sphi 0, %s31
      %s34 = sphi 0, %s32
      %s46 = sphi 0, %s48
      %s49 = sphi 0, %s46
      %s50 = sphi 0, %s49
      %s66 = sphi 0, %s50
      %s74 = sphi 0, %s76
      %s77 = sphi 0, %s74
      %s78 = sphi 0, %s77
      %s94 = sphi 0, %s78
      %s100 = sphi 0, %s102
      %s103 = sphi 0, %s100
      %s104 = sphi 0, %s103
      %s120 = sphi 0, %s104
      %s126 = sphi 0, %s128
      %s129 = sphi 0, %s126
      %s130 = sphi 0, %s129
      %s146 = sphi 0, %s130
    $region4: #{tpu_custom_call.1} parent=1 // loop_header_branch
      %25 = sbr.rel (%p23) target = $region8
    $region5: #{tpu_custom_call.1} parent=1 // loop_body
      %s27 = ssub.s32 %s22, 1
      %s28 = ssub.s32 %s22, 2
      %s35 = sadd.s32 1, %s30
      %p36 = scmp.ge.s32.totalorder %s35, 1
      %s37 = scalar_select %p36, 0, %s35
      %s38 = sadd.s32 1, %s29
      %s39 = scalar_select %p36, %s38, %s29
      %p40 = scmp.ge.s32.totalorder %s39, 2
      %s41 = scalar_select %p40, 0, %s39
      %s42 = ssub.s32 %s29, %s41
      %s43 = ssub.s32 %s30, %s37
      %s44 = sor.u32 %s42, %s43
      %p45 = scmp.eq.s32.totalorder %s44, 0
      %s47 = sadd.s32 %s46, 1
      %s48 = scalar_select %p45, %s46, %s47
      %p51 = pneg %p45
      %p52 = scmp.eq.s32.totalorder %s22, 1
      %p53 = por %p51, %p52
      %p54 = scmp.ne.s32.totalorder %s46, %s49
      %p55 = scmp.eq.s32.totalorder %s22, 0
      %p56 = por %p54, %p55
      %p57 = scmp.ne.s32.totalorder %s46, %s49
      %p58 = scmp.eq.s32.totalorder %s27, 1
      %p59 = por %p57, %p58
      %p60 = scmp.ne.s32.totalorder %s49, %s50
      %p61 = scmp.eq.s32.totalorder %s27, 0
      %p62 = por %p60, %p61
      %p63 = scmp.ne.s32.totalorder %s49, %s50
      %p64 = scmp.eq.s32.totalorder %s28, 1
      %p65 = por %p63, %p64
      %p67 = scmp.ne.s32.totalorder %s50, %s66
      %p68 = scmp.eq.s32.totalorder %s28, 0
      %p69 = por %p67, %p68
      %s70 = ssub.s32 %s29, %s41
      %s71 = ssub.s32 %s30, %s37
      %s72 = sor.u32 %s70, %s71
      %p73 = scmp.eq.s32.totalorder %s72, 0
      %s75 = sadd.s32 %s74, 1
      %s76 = scalar_select %p73, %s74, %s75
      %p79 = pneg %p73
      %p80 = scmp.eq.s32.totalorder %s22, 1
      %p81 = por %p79, %p80
      %p82 = scmp.ne.s32.totalorder %s74, %s77
      %p83 = scmp.eq.s32.totalorder %s22, 0
      %p84 = por %p82, %p83
      %p85 = scmp.ne.s32.totalorder %s74, %s77
      %p86 = scmp.eq.s32.totalorder %s27, 1
      %p87 = por %p85, %p86
      %p88 = scmp.ne.s32.totalorder %s77, %s78
      %p89 = scmp.eq.s32.totalorder %s27, 0
      %p90 = por %p88, %p89
      %p91 = scmp.ne.s32.totalorder %s77, %s78
      %p92 = scmp.eq.s32.totalorder %s28, 1
      %p93 = por %p91, %p92
      %p95 = scmp.ne.s32.totalorder %s78, %s94
      %p96 = scmp.eq.s32.totalorder %s28, 0
      %p97 = por %p95, %p96
      %s98 = ssub.s32 %s29, %s41
      %p99 = scmp.eq.s32.totalorder %s98, 0
      %s101 = sadd.s32 %s100, 1
      %s102 = scalar_select %p99, %s100, %s101
      %p105 = pneg %p99
      %p106 = scmp.eq.s32.totalorder %s22, 1
      %p107 = por %p105, %p106
      %p108 = scmp.ne.s32.totalorder %s100, %s103
      %p109 = scmp.eq.s32.totalorder %s22, 0
      %p110 = por %p108, %p109
      %p111 = scmp.ne.s32.totalorder %s100, %s103
      %p112 = scmp.eq.s32.totalorder %s27, 1
      %p113 = por %p111, %p112
      %p114 = scmp.ne.s32.totalorder %s103, %s104
      %p115 = scmp.eq.s32.totalorder %s27, 0
      %p116 = por %p114, %p115
      %p117 = scmp.ne.s32.totalorder %s103, %s104
      %p118 = scmp.eq.s32.totalorder %s28, 1
      %p119 = por %p117, %p118
      %p121 = scmp.ne.s32.totalorder %s104, %s120
      %p122 = scmp.eq.s32.totalorder %s28, 0
      %p123 = por %p121, %p122
      %s124 = ssub.s32 %s29, %s41
      %p125 = scmp.eq.s32.totalorder %s124, 0
      %s127 = sadd.s32 %s126, 1
      %s128 = scalar_select %p125, %s126, %s127
      %p131 = pneg %p125
      %p132 = scmp.eq.s32.totalorder %s22, 1
      %p133 = por %p131, %p132
      %p134 = scmp.ne.s32.totalorder %s126, %s129
      %p135 = scmp.eq.s32.totalorder %s22, 0
      %p136 = por %p134, %p135
      %p137 = scmp.ne.s32.totalorder %s126, %s129
      %p138 = scmp.eq.s32.totalorder %s27, 1
      %p139 = por %p137, %p138
      %p140 = scmp.ne.s32.totalorder %s129, %s130
      %p141 = scmp.eq.s32.totalorder %s27, 0
      %p142 = por %p140, %p141
      %p143 = scmp.ne.s32.totalorder %s129, %s130
      %p144 = scmp.eq.s32.totalorder %s28, 1
      %p145 = por %p143, %p144
      %p147 = scmp.ne.s32.totalorder %s130, %s146
      %p148 = scmp.eq.s32.totalorder %s28, 0
      %p149 = por %p147, %p148
      %p150 = scmp.le.s32.totalorder 1, %s22
      %p151 = scmp.lt.s32.totalorder %s22, 3
      %p152 = pnand %p150, %p151
      %p153 = pneg %p152
      // Predicated region
      $region9: #{tpu_custom_call.1} parent=5 // pred_check
        _
      $region10: #{tpu_custom_call.1} parent=5 // pred_check_branch
        %155 = sbr.rel (%p152) target = $region12
      $region11: #{tpu_custom_call.1} parent=5 // pred_region
        %s156 = ssub.s32 %s22, 1
      $region12: #{tpu_custom_call.1} parent=5 // pred_fallthru
        _
      %p157 = scmp.lt.s32.totalorder %s22, 2
      // Predicated region
      $region13: #{tpu_custom_call.1} parent=5 // pred_check
        %p158 = pneg %p157
      $region14: #{tpu_custom_call.1} parent=5 // pred_check_branch
        %160 = sbr.rel (%p158) target = $region16
      $region15: #{tpu_custom_call.1} parent=5 // pred_region
        // Predicated region
        $region17: #{tpu_custom_call.1} parent=15 // pred_check
          %p161 = pneg %p56
        $region18: #{tpu_custom_call.1} parent=15 // pred_check_branch
          %163 = sbr.rel (%p161) target = $region20
        $region19: #{tpu_custom_call.1} parent=15 // pred_region
          %s164 = sand.u32 %s46, 1
          %s165 = scalar_lea.sflag [#allocation5], %s164
          %s166 = sand.u32 %s46, 1
          %s167 = smul.addr %s166, 8
          %s168 = scalar_lea.vmem [#allocation4], %s167
          %s170 = ssub.s32 128, 128
          %171 = vsyncadd %s165, %s170
          %s172 = sadd.s32 %s30, %s29
          %s173 = smul.addr %s172, 128
          %s174 = scalar_lea.hbm %s0, %s173
          %s176 = sshll.u32 %s168, 4
          %s177 = int_to_ptr.vmem [resolvable:$true] %s176
          %179 = dma.hbm_to_vmem [thread:$0]  %s174, 128, %s177, %s165
        $region20: #{tpu_custom_call.1} parent=15 // pred_fallthru
          _
        // Predicated region
        $region21: #{tpu_custom_call.1} parent=15 // pred_check
          %p180 = pneg %p84
        $region22: #{tpu_custom_call.1} parent=15 // pred_check_branch
          %182 = sbr.rel (%p180) target = $region24
        $region23: #{tpu_custom_call.1} parent=15 // pred_region
          %s183 = sand.u32 %s74, 1
          %s184 = scalar_lea.sflag [#allocation8], %s183
          %s185 = sand.u32 %s74, 1
          %s186 = smul.addr %s185, 8
          %s187 = scalar_lea.vmem [#allocation7], %s186
          %s189 = ssub.s32 128, 128
          %190 = vsyncadd %s184, %s189
          %s191 = sadd.s32 %s30, %s29
          %s192 = smul.addr %s191, 128
          %s193 = scalar_lea.hbm %s1, %s192
          %s195 = sshll.u32 %s187, 4
          %s196 = int_to_ptr.vmem [resolvable:$true] %s195
          %198 = dma.hbm_to_vmem [thread:$0]  %s193, 128, %s196, %s184
        $region24: #{tpu_custom_call.1} parent=15 // pred_fallthru
          _
      $region16: #{tpu_custom_call.1} parent=5 // pred_fallthru
        _
      %p199 = scmp.le.s32.totalorder 1, %s22
      %p200 = scmp.lt.s32.totalorder %s22, 3
      %p201 = pnand %p199, %p200
      %p202 = pneg %p201
      // Predicated region
      $region25: #{tpu_custom_call.1} parent=5 // pred_check
        _
      $region26: #{tpu_custom_call.1} parent=5 // pred_check_branch
        %204 = sbr.rel (%p201) target = $region28
      $region27: #{tpu_custom_call.1} parent=5 // pred_region
        %s205 = ssub.s32 %s22, 1
        %s206 = sand.u32 %s49, 1
        %s207 = scalar_lea.sflag [#allocation5], %s206
        %s208 = sand.u32 %s49, 1
        %s209 = smul.addr %s208, 8
        %s210 = scalar_lea.vmem [#allocation4], %s209
        // Predicated region
        $region29: #{tpu_custom_call.1} parent=27 // pred_check
          %p211 = pneg %p62
        $region30: #{tpu_custom_call.1} parent=27 // pred_check_branch
          %213 = sbr.rel (%p211) target = $region32
        $region31: #{tpu_custom_call.1} parent=27 // pred_region
          %214 = dma.done %s207, 128
        $region32: #{tpu_custom_call.1} parent=27 // pred_fallthru
          _
        %s215 = sand.u32 %s77, 1
        %s216 = scalar_lea.sflag [#allocation8], %s215
        %s217 = sand.u32 %s77, 1
        %s218 = smul.addr %s217, 8
        %s219 = scalar_lea.vmem [#allocation7], %s218
        // Predicated region
        $region33: #{tpu_custom_call.1} parent=27 // pred_check
          %p220 = pneg %p90
        $region34: #{tpu_custom_call.1} parent=27 // pred_check_branch
          %222 = sbr.rel (%p220) target = $region36
        $region35: #{tpu_custom_call.1} parent=27 // pred_region
          %223 = dma.done %s216, 128
        $region36: #{tpu_custom_call.1} parent=27 // pred_fallthru
          _
        %s224 = sand.u32 %s49, 1
        %s225 = scalar_lea.sflag [#allocation5], %s224
        %s226 = sand.u32 %s49, 1
        %s227 = smul.addr %s226, 8
        %s228 = scalar_lea.vmem [#allocation4], %s227
        %p229 = pneg %p62
        %p230 = pneg %p59
        %s231 = sand.u32 %s77, 1
        %s232 = scalar_lea.sflag [#allocation8], %s231
        %s233 = sand.u32 %s77, 1
        %s234 = smul.addr %s233, 8
        %s235 = scalar_lea.vmem [#allocation7], %s234
        %p236 = pneg %p90
        %p237 = pneg %p87
        %p238 = pneg %p116
        %p239 = pneg %p113
        %s240 = sand.u32 %s103, 1
        %s241 = scalar_lea.sflag [#allocation6], %s240
        %s242 = sand.u32 %s103, 1
        %s243 = scalar_lea.vmem [#allocation9], %s242
        %p244 = pneg %p142
        %p245 = pneg %p139
        %s246 = sand.u32 %s129, 1
        %s247 = scalar_lea.sflag [#allocation11], %s246
        %s248 = sand.u32 %s129, 1
        %s249 = scalar_lea.vmem [#allocation10], %s248
        %p250 = scmp.eq.s32.totalorder %s32, 0
        // Predicated region
        $region37: #{tpu_custom_call.1} parent=27 // pred_check
          %p251 = pneg %p250
        $region38: #{tpu_custom_call.1} parent=27 // pred_check_branch
          %253 = sbr.rel (%p251) target = $region40
        $region39: #{tpu_custom_call.1} parent=27 // pred_region
          %254 = vst [vmem:[#allocation2] sm:$0xff] 0.0
          %255 = vst [vmem:[#allocation3] sm:$0xff] 0.0
        $region40: #{tpu_custom_call.1} parent=27 // pred_fallthru
          _
        %v256 = vld [vmem:[%s210] sm:$0xff]
        %v257 = vld [vmem:[%s219] sm:$0xff]
        %v258 = vmul.f32 %v256, 0.5
        %v259 = vtanh.pop %v258
        %v260 = vadd.f32 %v259, 1.0
        %v261 = vmul.f32 %v260, 0.5
        %v262 = vld [vmem:[#allocation2] sm:$0xff]
        %v263 = vmul.f32 %v261, %v257
        %v264 = vadd.f32 %v262, %v263
        %265 = vst [vmem:[#allocation2] sm:$0xff] %v264
        %v266 = vld [vmem:[#allocation3] sm:$0xff]
        %v267 = vadd.f32 %v261, %v257
        %v268 = vadd.f32 %v266, %v267
        %269 = vst [vmem:[#allocation3] sm:$0xff] %v268
        // Predicated region
        $region41: #{tpu_custom_call.1} parent=27 // pred_check
          %p270 = pneg %p250
        $region42: #{tpu_custom_call.1} parent=27 // pred_check_branch
          %272 = sbr.rel (%p270) target = $region44
        $region43: #{tpu_custom_call.1} parent=27 // pred_region
          %v273 = vld [vmem:[#allocation2] sm:$0xff]
          %v274 = vrot.slane %v273, 4
          %v275 = vadd.f32 %v273, %v274
          %v276 = vrot.slane %v275, 2
          %v277 = vadd.f32 %v275, %v276
          %v278 = vrot.slane %v277, 1
          %v279 = vadd.f32 %v277, %v278
          %280 = vst [vmem:[%s243] sm:$0x1] %v279
          %v281 = vld [vmem:[#allocation3] sm:$0xff]
          %v282 = vrot.slane %v281, 4
          %v283 = vadd.f32 %v281, %v282
          %v284 = vrot.slane %v283, 2
          %v285 = vadd.f32 %v283, %v284
          %v286 = vrot.slane %v285, 1
          %v287 = vadd.f32 %v285, %v286
          %288 = vst [vmem:[%s249] sm:$0x1] %v287
        $region44: #{tpu_custom_call.1} parent=27 // pred_fallthru
          _
        %s289 = sand.u32 %s103, 1
        %s290 = scalar_lea.sflag [#allocation6], %s289
        %s291 = sand.u32 %s103, 1
        %s292 = scalar_lea.vmem [#allocation9], %s291
        %s293 = sand.u32 %s129, 1
        %s294 = scalar_lea.sflag [#allocation11], %s293
        %s295 = sand.u32 %s129, 1
        %s296 = scalar_lea.vmem [#allocation10], %s295
        // Predicated region
        $region45: #{tpu_custom_call.1} parent=27 // pred_check
          %p297 = pneg %p113
        $region46: #{tpu_custom_call.1} parent=27 // pred_check_branch
          %299 = sbr.rel (%p297) target = $region48
        $region47: #{tpu_custom_call.1} parent=27 // pred_region
          %s301 = ssub.s32 16, 16
          %302 = vsyncadd %s290, %s301
          %s303 = smul.addr %s31, 16
          %s304 = scalar_lea.hbm %s2, %s303
          %s306 = sshll.u32 %s292, 4
          %s307 = int_to_ptr.vmem [resolvable:$true] %s306
          %309 = dma.vmem_to_hbm [thread:$0]  %s307, 16, %s304, %s290
        $region48: #{tpu_custom_call.1} parent=27 // pred_fallthru
          _
        // Predicated region
        $region49: #{tpu_custom_call.1} parent=27 // pred_check
          %p310 = pneg %p139
        $region50: #{tpu_custom_call.1} parent=27 // pred_check_branch
          %312 = sbr.rel (%p310) target = $region52
        $region51: #{tpu_custom_call.1} parent=27 // pred_region
          %s314 = ssub.s32 16, 16
          %315 = vsyncadd %s294, %s314
          %s316 = smul.addr %s31, 16
          %s317 = scalar_lea.hbm %s3, %s316
          %s319 = sshll.u32 %s296, 4
          %s320 = int_to_ptr.vmem [resolvable:$true] %s319
          %322 = dma.vmem_to_hbm [thread:$0]  %s320, 16, %s317, %s294
        $region52: #{tpu_custom_call.1} parent=27 // pred_fallthru
          _
      $region28: #{tpu_custom_call.1} parent=5 // pred_fallthru
        _
      %p323 = scmp.le.s32.totalorder 2, %s22
      // Predicated region
      $region53: #{tpu_custom_call.1} parent=5 // pred_check
        %p324 = pneg %p323
      $region54: #{tpu_custom_call.1} parent=5 // pred_check_branch
        %326 = sbr.rel (%p324) target = $region56
      $region55: #{tpu_custom_call.1} parent=5 // pred_region
        %s327 = ssub.s32 %s22, 2
        // Predicated region
        $region57: #{tpu_custom_call.1} parent=55 // pred_check
          %p328 = pneg %p119
        $region58: #{tpu_custom_call.1} parent=55 // pred_check_branch
          %330 = sbr.rel (%p328) target = $region60
        $region59: #{tpu_custom_call.1} parent=55 // pred_region
          %s331 = sand.u32 %s104, 1
          %s332 = scalar_lea.sflag [#allocation6], %s331
          %s333 = sand.u32 %s104, 1
          %s334 = scalar_lea.vmem [#allocation9], %s333
          %335 = dma.done %s332, 16
        $region60: #{tpu_custom_call.1} parent=55 // pred_fallthru
          _
        // Predicated region
        $region61: #{tpu_custom_call.1} parent=55 // pred_check
          %p336 = pneg %p145
        $region62: #{tpu_custom_call.1} parent=55 // pred_check_branch
          %338 = sbr.rel (%p336) target = $region64
        $region63: #{tpu_custom_call.1} parent=55 // pred_region
          %s339 = sand.u32 %s130, 1
          %s340 = scalar_lea.sflag [#allocation11], %s339
          %s341 = sand.u32 %s130, 1
          %s342 = scalar_lea.vmem [#allocation10], %s341
          %343 = dma.done %s340, 16
        $region64: #{tpu_custom_call.1} parent=55 // pred_fallthru
          _
      $region56: #{tpu_custom_call.1} parent=5 // pred_fallthru
        _
    $region6: #{tpu_custom_call.1} parent=1 // loop_footer
      %s26 = sadd.s32 1, %s22
    $region7: #{tpu_custom_call.1} parent=1 // loop_footer_branch
      %21 = sbr.rel target = $region3
    $region8: #{tpu_custom_call.1} parent=1 // loop_exit
      _
    %344 = vsyncpa [#allocation5], 1
    %s345 = scalar_lea.sflag [#allocation5], 1
    %346 = vsyncpa %s345, 1
    %347 = vsyncpa [#allocation8], 1
    %s348 = scalar_lea.sflag [#allocation8], 1
    %349 = vsyncpa %s348, 1
    %350 = vsyncpa [#allocation6], 1
    %s351 = scalar_lea.sflag [#allocation6], 1
    %352 = vsyncpa %s351, 1
    %353 = vsyncpa [#allocation11], 1
    %s354 = scalar_lea.sflag [#allocation11], 1
    %355 = vsyncpa %s354, 1

</llo_original>
